<compile_context>
chip_gen: v7x
topology: tpu7x:2x2x1
jax: 0.10.0
libtpu: 0.0.40
codegen_flags: <defaults>
</compile_context>

<pallas_src>
from functools import partial

import numpy as np
import jax
import jax.numpy as jnp
from jax.experimental import pallas as pl
from jax.experimental.pallas import tpu as pltpu

LN_EPS = 1e-5
_VMEM_LIMIT_BYTES = 40 * 1024 * 1024   # raised scoped-VMEM limit (safe on v5e..v7x)
_VMEM_TILE_BUDGET = 26 * 1024 * 1024   # what the tiling math is allowed to use


def _round_up(x, m):
    return (x + m - 1) // m * m


def _choose_m_block(M, K, Cpad, out_itemsize, requested):
    """Pick the M row-block: as large as the VMEM budget allows (amortizes the
    ~0.35 us per-grid-step overhead), a multiple of 8, preferring sizes that
    divide M so no HBM pad-copy of the im2col buffer is needed."""
    per_row = (2 * K * 2                 # cols tile, bf16, double-buffered
               + 2 * Cpad * out_itemsize  # output tile, double-buffered
               + 2 * Cpad * 4)           # f32 matmul/LN temporaries
    fixed = 2 * K * Cpad * 2 + 3 * Cpad * 4   # resident conv weight (+buffer) and LN params
    cap = (_VMEM_TILE_BUDGET - fixed) // per_row
    cap = max(8, min(requested, cap) // 8 * 8)
    if M <= cap:
        return M, M                      # single block: no padding needed
    for cand in range(cap, max(cap // 2, 8) - 1, -8):
        if M % cand == 0:
            return cand, M               # divisor found: no pad copy
    return cap, _round_up(M, cap)        # fall back to padding the ragged tail


def _conv_bias_layernorm_kernel(cols_ref, w_ref, b_ref, g_ref, beta_ref, o_ref, *, cout):
    """Fused conv-as-matmul + bias + LayerNorm over the channel (lane) dim.

    Padded output lanes (Cout..Cpad) carry exactly 0 (weight columns, bias,
    gamma, beta all zero-padded), so sum/cout statistics are exact."""
    y = jnp.dot(cols_ref[...], w_ref[...], preferred_element_type=jnp.float32)
    y = y + b_ref[...]                                    # (M_blk, Cpad) + (1, Cpad)
    inv_c = 1.0 / float(cout)
    mu = jnp.sum(y, axis=-1, keepdims=True) * inv_c       # padded lanes contribute 0
    ex2 = jnp.sum(y * y, axis=-1, keepdims=True) * inv_c
    var = ex2 - mu * mu                                   # both reductions straight from y
    inv = jax.lax.rsqrt(var + LN_EPS)
    o_ref[...] = ((y - mu) * inv * g_ref[...] + beta_ref[...]).astype(o_ref.dtype)


def _im2col_stride2(x_nhwc):
    """3x3 / stride-2 / pad-1 patches -> (B*Hout*Wout, 9*Cin), K order (kh, kw, cin)."""
    B, Hin, Win, Cin = x_nhwc.shape
    Hout = (Hin + 2 - 3) // 2 + 1
    Wout = (Win + 2 - 3) // 2 + 1
    xp = jnp.pad(x_nhwc, ((0, 0), (1, 1), (1, 1), (0, 0)))
    taps = []
    for kh in range(3):
        for kw in range(3):
            taps.append(jax.lax.slice(
                xp,
                (0, kh, kw, 0),
                (B, kh + 2 * (Hout - 1) + 1, kw + 2 * (Wout - 1) + 1, Cin),
                (1, 2, 2, 1)))                            # (B, Hout, Wout, Cin)
    patches = jnp.stack(taps, axis=3)                     # (B, Hout, Wout, 9, Cin)
    return patches.reshape(B * Hout * Wout, 9 * Cin), Hout, Wout


@partial(jax.jit, static_argnames=("m_blk", "out_dtype"))
def _downsamples_impl(x, conv_w, conv_b, ln_w, ln_b, *, m_blk, out_dtype):
    B, Cin, Hin, Win = x.shape
    Cout = conv_w.shape[0]
    Cpad = _round_up(Cout, 128)                           # lane-dense output stores
    K = 9 * Cin                                           # never padded in HBM (dominant read)

    # bf16 before the gather so every producer intermediate is half-size.
    x_nhwc = jnp.transpose(x, (0, 2, 3, 1)).astype(jnp.bfloat16)
    cols, Hout, Wout = _im2col_stride2(x_nhwc)            # (M, K), bf16
    M = B * Hout * Wout

    m_blk, M_pad = _choose_m_block(M, K, Cpad, jnp.dtype(out_dtype).itemsize, m_blk)
    if M_pad != M:
        cols = jnp.pad(cols, ((0, M_pad - M), (0, 0)))    # padded rows are sliced off below

    # (Cout, Cin, 3, 3) -> (kh, kw, cin, cout) -> (K, Cout) matching im2col K order.
    wmat = jnp.transpose(conv_w, (2, 3, 1, 0)).reshape(K, Cout)

    def pad_c(a):
        return jnp.pad(a, ((0, 0), (0, Cpad - Cout))) if Cpad != Cout else a

    wmat = pad_c(wmat).astype(jnp.bfloat16)
    bias = pad_c(conv_b.reshape(1, Cout).astype(jnp.float32))
    gamma = pad_c(ln_w.reshape(1, Cout).astype(jnp.float32))
    beta = pad_c(ln_b.reshape(1, Cout).astype(jnp.float32))

    kernel = partial(_conv_bias_layernorm_kernel, cout=Cout)
    out = pl.pallas_call(
        kernel,
        out_shape=jax.ShapeDtypeStruct((M_pad, Cpad), out_dtype),
        grid=(M_pad // m_blk,),
        in_specs=[
            # If DMA shows up exposed after the larger tiles, raise pipeline
            # depth here via pipeline_mode=pl.Buffered(3) instead of padding K.
            pl.BlockSpec((m_blk, K), lambda i: (i, 0)),   # im2col rows (bf16)
            pl.BlockSpec((K, Cpad), lambda i: (0, 0)),    # conv weight (VMEM resident)
            pl.BlockSpec((1, Cpad), lambda i: (0, 0)),    # conv bias
            pl.BlockSpec((1, Cpad), lambda i: (0, 0)),    # LN gamma
            pl.BlockSpec((1, Cpad), lambda i: (0, 0)),    # LN beta
        ],
        out_specs=pl.BlockSpec((m_blk, Cpad), lambda i: (i, 0)),
        compiler_params=pltpu.CompilerParams(
            dimension_semantics=("parallel",),
            vmem_limit_bytes=_VMEM_LIMIT_BYTES,
            allow_input_fusion=[True, False, False, False, False],
        ),
    )(cols, wmat, bias, gamma, beta)

    out = out[:M, :Cout].reshape(B, Hout * Wout, Cout)
    return out


def downsamples_forward(x, conv_w, conv_b, ln_w, ln_b, *, m_blk=1024,
                        out_dtype=jnp.bfloat16):
    """x: (B, Cin, Hin, Win) NCHW; conv_w: (Cout, Cin, 3, 3).

    Returns ((B, Hout*Wout, Cout) in out_dtype, Hout, Wout).  Matmul operands
    and the emitted output are bf16 (f32 accumulation / LN statistics), so
    results match the PyTorch f32 forward only to bf16-level tolerance.
    """
    _, _, Hin, Win = x.shape
    Hout = (Hin + 2 - 3) // 2 + 1
    Wout = (Win + 2 - 3) // 2 + 1
    out = _downsamples_impl(x, conv_w, conv_b, ln_w, ln_b,
                            m_blk=m_blk, out_dtype=out_dtype)
    return out, Hout, Wout


if __name__ == "__main__":
    # Small shapes consistent with the module: NCHW input, Conv2d(4 -> 32, k=3, s=2, p=1).
    B, Cin, Hin, Win = 2, 4, 16, 16
    Cout = 32

    key = jax.random.PRNGKey(0)
    kx, kw, kb, kg, kbt = jax.random.split(key, 5)
    x = jax.random.normal(kx, (B, Cin, Hin, Win), dtype=jnp.float32)
    fan_out = 3 * 3 * Cout                                  # module's kaiming-style init
    conv_w = jax.random.normal(kw, (Cout, Cin, 3, 3), dtype=jnp.float32) * np.sqrt(2.0 / fan_out)
    conv_b = 0.02 * jax.random.normal(kb, (Cout,), dtype=jnp.float32)
    ln_w = 1.0 + 0.02 * jax.random.normal(kg, (Cout,), dtype=jnp.float32)
    ln_b = 0.02 * jax.random.normal(kbt, (Cout,), dtype=jnp.float32)

    out, Hout, Wout = downsamples_forward(x, conv_w, conv_b, ln_w, ln_b)
    out = jax.block_until_ready(out)
    assert out.shape == (B, Hout * Wout, Cout) and (Hout, Wout) == (Hin // 2, Win // 2)

    # Pure-JAX reference mirroring the PyTorch forward exactly (f32 everywhere).
    dn = jax.lax.conv_dimension_numbers(x.shape, conv_w.shape, ("NCHW", "OIHW", "NCHW"))
    y = jax.lax.conv_general_dilated(x, conv_w, window_strides=(2, 2),
                                     padding=((1, 1), (1, 1)), dimension_numbers=dn)
    y = y + conv_b[None, :, None, None]
    y = y.reshape(B, Cout, Hout * Wout).transpose(0, 2, 1)   # flatten(2).transpose(1,2)
    mu = y.mean(-1, keepdims=True)
    var = ((y - mu) ** 2).mean(-1, keepdims=True)
    ref = (y - mu) / jnp.sqrt(var + LN_EPS) * ln_w + ln_b

    # bf16 matmul operands + bf16 output => relaxed tolerance vs the f32 reference.
    np.testing.assert_allclose(np.asarray(out.astype(jnp.float32)), np.asarray(ref),
                               atol=5e-2, rtol=5e-2)
    print("KERNEL_OK")
</pallas_src>

<mosaic_0001>
module attributes {stable_mosaic.version = 11 : i64} {
  func.func @_conv_bias_layernorm_kernel(%arg0: i32, %arg1: memref<128x36xbf16, #tpu.memory_space<vmem>>, %arg2: memref<36x128xbf16, #tpu.memory_space<vmem>>, %arg3: memref<1x128xf32, #tpu.memory_space<vmem>>, %arg4: memref<1x128xf32, #tpu.memory_space<vmem>>, %arg5: memref<1x128xf32, #tpu.memory_space<vmem>>, %arg6: memref<128x128xbf16, #tpu.memory_space<vmem>>) attributes {dimension_semantics = [#tpu.dimension_semantics<parallel>], iteration_bounds = array<i64: 1>, scalar_prefetch = 0 : i64, scratch_operands = 0 : i64, tpu.core_type = #tpu.core_type<tc>, window_params = [{transform_indices = @transform_0, window_bounds = array<i64: 128, 36>}, {pipeline_mode = #tpu.pipeline_mode<synchronous>, transform_indices = @transform_1, window_bounds = array<i64: 36, 128>}, {pipeline_mode = #tpu.pipeline_mode<synchronous>, transform_indices = @transform_2, window_bounds = array<i64: 1, 128>}, {pipeline_mode = #tpu.pipeline_mode<synchronous>, transform_indices = @transform_3, window_bounds = array<i64: 1, 128>}, {pipeline_mode = #tpu.pipeline_mode<synchronous>, transform_indices = @transform_4, window_bounds = array<i64: 1, 128>}, {transform_indices = @transform_5, window_bounds = array<i64: 128, 128>}]} {
    %c0 = arith.constant 0 : index
    %c0_0 = arith.constant 0 : index
    %0 = vector.load %arg1[%c0, %c0_0] : memref<128x36xbf16, #tpu.memory_space<vmem>>, vector<128x36xbf16>
    %c0_1 = arith.constant 0 : index
    %c0_2 = arith.constant 0 : index
    %1 = vector.load %arg2[%c0_1, %c0_2] : memref<36x128xbf16, #tpu.memory_space<vmem>>, vector<36x128xbf16>
    %cst = arith.constant dense<0.000000e+00> : vector<128x128xf32>
    %2 = tpu.matmul %0, %1, %cst {dimension_numbers = #tpu.dot_dimension_numbers<[1], [0], [0], [1], [0, 0, 1, 1], [], []>} : vector<128x36xbf16>, vector<36x128xbf16>, vector<128x128xf32> -> vector<128x128xf32>
    %c0_3 = arith.constant 0 : index
    %c0_4 = arith.constant 0 : index
    %3 = vector.load %arg3[%c0_3, %c0_4] : memref<1x128xf32, #tpu.memory_space<vmem>>, vector<1x128xf32>
    %4 = vector.broadcast %3 : vector<1x128xf32> to vector<128x128xf32>
    %5 = arith.addf %2, %4 : vector<128x128xf32>
    %cst_5 = arith.constant dense<0.000000e+00> : vector<128xf32>
    %6 = vector.multi_reduction <add>, %5, %cst_5 [1] : vector<128x128xf32> to vector<128xf32>
    %7 = vector.shape_cast %6 : vector<128xf32> to vector<128x1xf32>
    %cst_6 = arith.constant 3.125000e-02 : f32
    %8 = vector.broadcast %cst_6 : f32 to vector<128x1xf32>
    %9 = arith.mulf %7, %8 : vector<128x1xf32>
    %10 = arith.mulf %5, %5 : vector<128x128xf32>
    %cst_7 = arith.constant dense<0.000000e+00> : vector<128xf32>
    %11 = vector.multi_reduction <add>, %10, %cst_7 [1] : vector<128x128xf32> to vector<128xf32>
    %12 = vector.shape_cast %11 : vector<128xf32> to vector<128x1xf32>
    %cst_8 = arith.constant 3.125000e-02 : f32
    %13 = vector.broadcast %cst_8 : f32 to vector<128x1xf32>
    %14 = arith.mulf %12, %13 : vector<128x1xf32>
    %15 = arith.mulf %9, %9 : vector<128x1xf32>
    %16 = arith.subf %14, %15 : vector<128x1xf32>
    %cst_9 = arith.constant 9.99999974E-6 : f32
    %17 = vector.broadcast %cst_9 : f32 to vector<128x1xf32>
    %18 = arith.addf %16, %17 : vector<128x1xf32>
    %19 = math.rsqrt %18 : vector<128x1xf32>
    %20 = vector.broadcast %9 : vector<128x1xf32> to vector<128x128xf32>
    %21 = arith.subf %5, %20 : vector<128x128xf32>
    %22 = vector.broadcast %19 : vector<128x1xf32> to vector<128x128xf32>
    %23 = arith.mulf %21, %22 : vector<128x128xf32>
    %c0_10 = arith.constant 0 : index
    %c0_11 = arith.constant 0 : index
    %24 = vector.load %arg4[%c0_10, %c0_11] : memref<1x128xf32, #tpu.memory_space<vmem>>, vector<1x128xf32>
    %25 = vector.broadcast %24 : vector<1x128xf32> to vector<128x128xf32>
    %26 = arith.mulf %23, %25 : vector<128x128xf32>
    %c0_12 = arith.constant 0 : index
    %c0_13 = arith.constant 0 : index
    %27 = vector.load %arg5[%c0_12, %c0_13] : memref<1x128xf32, #tpu.memory_space<vmem>>, vector<1x128xf32>
    %28 = vector.broadcast %27 : vector<1x128xf32> to vector<128x128xf32>
    %29 = arith.addf %26, %28 : vector<128x128xf32>
    %30 = arith.truncf %29 : vector<128x128xf32> to vector<128x128xbf16>
    %c0_14 = arith.constant 0 : index
    %c0_15 = arith.constant 0 : index
    %31 = vector.load %arg6[%c0_14, %c0_15] : memref<128x128xbf16, #tpu.memory_space<vmem>>, vector<128x128xbf16>
    tpu.vector_store %arg6[%c0_14, %c0_15], %30 {strides = array<i32>} : memref<128x128xbf16, #tpu.memory_space<vmem>>, vector<128x128xbf16>,
    return
  }
  func.func @transform_0(%arg0: i32) -> (i32, i32) {
    %c0_i32 = arith.constant 0 : i32
    %c0_i32_0 = arith.constant 0 : i32
    return %arg0, %c0_i32 : i32, i32
  }
  func.func @transform_1(%arg0: i32) -> (i32, i32) {
    %c0_i32 = arith.constant 0 : i32
    %c0_i32_0 = arith.constant 0 : i32
    %c0_i32_1 = arith.constant 0 : i32
    return %c0_i32, %c0_i32_0 : i32, i32
  }
  func.func @transform_2(%arg0: i32) -> (i32, i32) {
    %c0_i32 = arith.constant 0 : i32
    %c0_i32_0 = arith.constant 0 : i32
    %c0_i32_1 = arith.constant 0 : i32
    return %c0_i32, %c0_i32_0 : i32, i32
  }
  func.func @transform_3(%arg0: i32) -> (i32, i32) {
    %c0_i32 = arith.constant 0 : i32
    %c0_i32_0 = arith.constant 0 : i32
    %c0_i32_1 = arith.constant 0 : i32
    return %c0_i32, %c0_i32_0 : i32, i32
  }
  func.func @transform_4(%arg0: i32) -> (i32, i32) {
    %c0_i32 = arith.constant 0 : i32
    %c0_i32_0 = arith.constant 0 : i32
    %c0_i32_1 = arith.constant 0 : i32
    return %c0_i32, %c0_i32_0 : i32, i32
  }
  func.func @transform_5(%arg0: i32) -> (i32, i32) {
    %c0_i32 = arith.constant 0 : i32
    %c0_i32_0 = arith.constant 0 : i32
    return %arg0, %c0_i32 : i32, i32
  }
}

</mosaic_0001>

<llo_original>
// kernel: _downsamples_impl.1
$region0: #{_downsamples_impl.1}
  #allocation0 [shape = 'u32[]', space=smem, size = 0x4, offset = 0x4, fixed_abs, tag = 'smem constant byte address 0x4 - core index']
  #allocation1 [shape = 'u32[144,128]{1,0:T(1,128)}', space=vmem, size = 0x12000, scoped, tag = 'internal scratch']
  %s0 = inlined_call_operand.vmem [shape: bf16[128,36], index: 0, kind: input, shape index: {}]
  %s1 = inlined_call_operand.vmem [shape: bf16[36,128], index: 1, kind: input, shape index: {}]
  %s2 = inlined_call_operand.vmem [shape: f32[1,128], index: 2, kind: input, shape index: {}]
  %s3 = inlined_call_operand.vmem [shape: f32[1,128], index: 3, kind: input, shape index: {}]
  %s4 = inlined_call_operand.vmem [shape: f32[1,128], index: 4, kind: input, shape index: {}]
  %s5 = inlined_call_operand.vmem [shape: bf16[128,128], index: 5, kind: output, shape index: {}]
  %s6 = sld [smem:[#allocation0]]
  $region30: #{_downsamples_impl.1} parent=0
    _
  %s8 = ssub.s32 1, %s6
  %s9 = scalar_select 0, %s8, %s6
  // Predicated region
  $region2: #{_downsamples_impl.1} parent=0 // pred_check
    _
  $region3: #{_downsamples_impl.1} parent=0 // pred_check_branch
    %11 = sbr.rel (0) target = $region5
  $region4: #{_downsamples_impl.1} parent=0 // pred_region
    _
  $region5: #{_downsamples_impl.1} parent=0 // pred_fallthru
    _
  // Predicated region
  $region6: #{_downsamples_impl.1} parent=0 // pred_check
    _
  $region7: #{_downsamples_impl.1} parent=0 // pred_check_branch
    %13 = sbr.rel (0) target = $region9
  $region8: #{_downsamples_impl.1} parent=0 // pred_region
    _
  $region9: #{_downsamples_impl.1} parent=0 // pred_fallthru
    _
  // Predicated region
  $region10: #{_downsamples_impl.1} parent=0 // pred_check
    _
  $region11: #{_downsamples_impl.1} parent=0 // pred_check_branch
    %15 = sbr.rel (0) target = $region13
  $region12: #{_downsamples_impl.1} parent=0 // pred_region
    _
  $region13: #{_downsamples_impl.1} parent=0 // pred_fallthru
    _
  // Predicated region
  $region14: #{_downsamples_impl.1} parent=0 // pred_check
    _
  $region15: #{_downsamples_impl.1} parent=0 // pred_check_branch
    %17 = sbr.rel (0) target = $region17
  $region16: #{_downsamples_impl.1} parent=0 // pred_region
    _
  $region17: #{_downsamples_impl.1} parent=0 // pred_fallthru
    _
  // Predicated region
  $region18: #{_downsamples_impl.1} parent=0 // pred_check
    _
  $region19: #{_downsamples_impl.1} parent=0 // pred_check_branch
    %19 = sbr.rel (0) target = $region21
  $region20: #{_downsamples_impl.1} parent=0 // pred_region
    _
  $region21: #{_downsamples_impl.1} parent=0 // pred_fallthru
    _
  %v21 = vld [vmem:[%s0] sm:$0xf]
  %v22 = vld [vmem:[%s0 + $0x4] sm:$0xf]
  %v23 = vld [vmem:[%s0 + $0x8] sm:$0xf]
  %v24 = vld [vmem:[%s0 + $0xc] sm:$0xf]
  %v25 = vld [vmem:[%s0 + $0x10] sm:$0xf]
  %v26 = vld [vmem:[%s0 + $0x14] sm:$0xf]
  %v27 = vld [vmem:[%s0 + $0x18] sm:$0xf]
  %v28 = vld [vmem:[%s0 + $0x1c] sm:$0xf]
  %v29 = vld [vmem:[%s0 + $0x20] sm:$0xf]
  %v30 = vld [vmem:[%s0 + $0x24] sm:$0xf]
  %v31 = vld [vmem:[%s0 + $0x28] sm:$0xf]
  %v32 = vld [vmem:[%s0 + $0x2c] sm:$0xf]
  %v33 = vld [vmem:[%s0 + $0x30] sm:$0xf]
  %v34 = vld [vmem:[%s0 + $0x34] sm:$0xf]
  %v35 = vld [vmem:[%s0 + $0x38] sm:$0xf]
  %v36 = vld [vmem:[%s0 + $0x3c] sm:$0xf]
  %v37 = vld [vmem:[%s1] sm:$0xf]
  %v38 = vld [vmem:[%s1 + $0x4] sm:$0xf]
  %v39 = vld [vmem:[%s1 + $0x8] sm:$0xf]
  %v40 = vld [vmem:[%s1 + $0xc] sm:$0xf]
  %v41 = vld [vmem:[%s1 + $0x10] sm:$0x3]
  %v42 = vld [vmem:[%s2] sm:$0x1]
  %v44 = vlaneseq
  %v45 = vshrl.u32 %v44, 7
  %v46 = vsub.s32 0, %v45
  %v47 = vrot.slane %v42, %v46
  %v65 = vunpack.c.l.b16 %v21
  %v66 = vunpack.c.l.b16 %v22
  %v67 = vunpack.c.l.b16 %v23
  %v68 = vunpack.c.l.b16 %v24
  %v69 = vunpack.c.l.b16 %v25
  %v70 = vunpack.c.l.b16 %v26
  %v71 = vunpack.c.l.b16 %v27
  %v72 = vunpack.c.l.b16 %v28
  %v73 = vunpack.c.l.b16 %v29
  %v74 = vunpack.c.l.b16 %v30
  %v75 = vunpack.c.l.b16 %v31
  %v76 = vunpack.c.l.b16 %v32
  %v77 = vunpack.c.l.b16 %v33
  %v78 = vunpack.c.l.b16 %v34
  %v79 = vunpack.c.l.b16 %v35
  %v80 = vunpack.c.l.b16 %v36
  %v81 = vpack.c.b16 %v66, %v65
  %v82 = vpack.c.b16 %v68, %v67
  %v83 = vpack.c.b16 %v70, %v69
  %v84 = vpack.c.b16 %v72, %v71
  %v85 = vpack.c.b16 %v74, %v73
  %v86 = vpack.c.b16 %v76, %v75
  %v87 = vpack.c.b16 %v78, %v77
  %v88 = vpack.c.b16 %v80, %v79
  %v94 = vunpack.c.l.b16 %v37
  %v95 = vunpack.c.l.b16 %v38
  %v96 = vunpack.c.l.b16 %v39
  %v97 = vunpack.c.l.b16 %v40
  %v98 = vunpack.c.l.b16 %v41
  %v99 = vpack.c.b16 %v95, %v94
  %v100 = vpack.c.b16 %v97, %v96
  %v101 = vpack.c.b16 %v98, %v98
  %vm104 = vcmask 293888
  %v106 = vsel %vm104, %v81, 0
  %v109 = vsel %vm104, %v82, 0
  %v112 = vsel %vm104, %v83, 0
  %v115 = vsel %vm104, %v84, 0
  %v118 = vsel %vm104, %v85, 0
  %v121 = vsel %vm104, %v86, 0
  %v124 = vsel %vm104, %v87, 0
  %v127 = vsel %vm104, %v88, 0
  %vm129 = vcmask 1041408
  %v131 = vsel %vm129, %v101, 0
  %133 = vmatprep.subr.bf16.mxu0 0
  %134 = vmatpush1.bf16.msra.mxu0 %v99
  %135 = vmatprep.subr.bf16.mxu0 0
  %136 = vmatpush1.bf16.msra.mxu0 %v100
  %137 = vmatprep.subr.bf16.mxu0 0
  %138 = vmatpush1.bf16.msra.mxu0 %v131
  %139 = vmatprep.subr.bf16.mxu0 0
  %140 = vmatpush1.bf16.msra.mxu0 0
  %141 = vmatprep.subr.bf16.mxu0 0
  %142 = vmatpush1.bf16.msra.mxu0 0
  %143 = vmatprep.subr.bf16.mxu0 0
  %144 = vmatpush1.bf16.msra.mxu0 0
  %145 = vmatprep.subr.bf16.mxu0 0
  %146 = vmatpush1.bf16.msra.mxu0 0
  %147 = vmatprep.subr.bf16.mxu0 0
  %148 = vmatpush1.bf16.msra.mxu0 0
  %149 = vmatprep.subr.bf16.mxu0 0
  %150 = vmatpush1.bf16.msra.mxu0 0
  %151 = vmatprep.subr.bf16.mxu0 0
  %152 = vmatpush1.bf16.msra.mxu0 0
  %153 = vmatprep.subr.bf16.mxu0 0
  %154 = vmatpush1.bf16.msra.mxu0 0
  %155 = vmatprep.subr.bf16.mxu0 0
  %156 = vmatpush1.bf16.msra.mxu0 0
  %157 = vmatprep.subr.bf16.mxu0 0
  %158 = vmatpush1.bf16.msra.mxu0 0
  %159 = vmatprep.subr.bf16.mxu0 0
  %160 = vmatpush1.bf16.msra.mxu0 0
  %161 = vmatprep.subr.bf16.mxu0 0
  %162 = vmatpush1.bf16.msra.mxu0 0
  %163 = vmatprep.subr.bf16.mxu0 0
  %164 = vmatpush1.bf16.msra.mxu0 0
  %165 = vmatprep.mubr.bf16.mxu0 0
  %166 = vmatmul.mubr.bf16.gmra.mrb[0].mxu0 %v106
  %v167 = vpop.f32.mrb[0].mxu0
  %v168 = vadd.f32 %v47, %v167
  %v169 = vpop.f32.mrb[0].mxu0
  %v170 = vpop.f32.mrb[0].mxu0
  %v171 = vadd.f32 %v47, %v170
  %v172 = vpop.f32.mrb[0].mxu0
  %173 = vmatprep.mubr.bf16.mxu0 0
  %174 = vmatmul.mubr.bf16.gmra.mrb[0].mxu0 %v109
  %v175 = vpop.f32.mrb[0].mxu0
  %v176 = vadd.f32 %v47, %v175
  %v177 = vpop.f32.mrb[0].mxu0
  %v178 = vpop.f32.mrb[0].mxu0
  %v179 = vadd.f32 %v47, %v178
  %v180 = vpop.f32.mrb[0].mxu0
  %181 = vmatprep.mubr.bf16.mxu0 0
  %182 = vmatmul.mubr.bf16.gmra.mrb[0].mxu0 %v112
  %v183 = vpop.f32.mrb[0].mxu0
  %v184 = vadd.f32 %v47, %v183
  %v185 = vpop.f32.mrb[0].mxu0
  %v186 = vpop.f32.mrb[0].mxu0
  %v187 = vadd.f32 %v47, %v186
  %v188 = vpop.f32.mrb[0].mxu0
  %189 = vmatprep.mubr.bf16.mxu0 0
  %190 = vmatmul.mubr.bf16.gmra.mrb[0].mxu0 %v115
  %v191 = vpop.f32.mrb[0].mxu0
  %v192 = vadd.f32 %v47, %v191
  %v193 = vpop.f32.mrb[0].mxu0
  %v194 = vpop.f32.mrb[0].mxu0
  %v195 = vadd.f32 %v47, %v194
  %v196 = vpop.f32.mrb[0].mxu0
  %197 = vmatprep.mubr.bf16.mxu0 0
  %198 = vmatmul.mubr.bf16.gmra.mrb[0].mxu0 %v118
  %v199 = vpop.f32.mrb[0].mxu0
  %v200 = vadd.f32 %v47, %v199
  %v201 = vpop.f32.mrb[0].mxu0
  %v202 = vpop.f32.mrb[0].mxu0
  %v203 = vadd.f32 %v47, %v202
  %v204 = vpop.f32.mrb[0].mxu0
  %205 = vmatprep.mubr.bf16.mxu0 0
  %206 = vmatmul.mubr.bf16.gmra.mrb[0].mxu0 %v121
  %v207 = vpop.f32.mrb[0].mxu0
  %v208 = vadd.f32 %v47, %v207
  %v209 = vpop.f32.mrb[0].mxu0
  %v210 = vpop.f32.mrb[0].mxu0
  %v211 = vadd.f32 %v47, %v210
  %v212 = vpop.f32.mrb[0].mxu0
  %213 = vmatprep.mubr.bf16.mxu0 0
  %214 = vmatmul.mubr.bf16.gmra.mrb[0].mxu0 %v124
  %v215 = vpop.f32.mrb[0].mxu0
  %v216 = vadd.f32 %v47, %v215
  %v217 = vpop.f32.mrb[0].mxu0
  %v218 = vpop.f32.mrb[0].mxu0
  %v219 = vadd.f32 %v47, %v218
  %v220 = vpop.f32.mrb[0].mxu0
  %221 = vmatprep.mubr.bf16.mxu0 0
  %222 = vmatmul.mubr.bf16.gmra.mrb[0].mxu0 %v127
  %v223 = vpop.f32.mrb[0].mxu0
  %v224 = vadd.f32 %v47, %v223
  %v225 = vpop.f32.mrb[0].mxu0
  %v226 = vpop.f32.mrb[0].mxu0
  %v227 = vadd.f32 %v47, %v226
  %v228 = vpop.f32.mrb[0].mxu0
  %229 = vdwg.mxu0
  %230 = vadd.xlane.f32.xlu0 %v168
  %v231 = vpop.xlane.xlu0 %230
  %232 = vadd.xlane.f32.xlu0 %v171
  %v233 = vpop.xlane.xlu0 %232
  %234 = vadd.xlane.f32.xlu0 %v176
  %v235 = vpop.xlane.xlu0 %234
  %236 = vadd.xlane.f32.xlu0 %v179
  %v237 = vpop.xlane.xlu0 %236
  %238 = vadd.xlane.f32.xlu0 %v184
  %v239 = vpop.xlane.xlu0 %238
  %240 = vadd.xlane.f32.xlu0 %v187
  %v241 = vpop.xlane.xlu0 %240
  %242 = vadd.xlane.f32.xlu0 %v192
  %v243 = vpop.xlane.xlu0 %242
  %244 = vadd.xlane.f32.xlu0 %v195
  %v245 = vpop.xlane.xlu0 %244
  %246 = vadd.xlane.f32.xlu0 %v200
  %v247 = vpop.xlane.xlu0 %246
  %248 = vadd.xlane.f32.xlu0 %v203
  %v249 = vpop.xlane.xlu0 %248
  %250 = vadd.xlane.f32.xlu0 %v208
  %v251 = vpop.xlane.xlu0 %250
  %252 = vadd.xlane.f32.xlu0 %v211
  %v253 = vpop.xlane.xlu0 %252
  %254 = vadd.xlane.f32.xlu0 %v216
  %v255 = vpop.xlane.xlu0 %254
  %256 = vadd.xlane.f32.xlu0 %v219
  %v257 = vpop.xlane.xlu0 %256
  %258 = vadd.xlane.f32.xlu0 %v224
  %v259 = vpop.xlane.xlu0 %258
  %260 = vadd.xlane.f32.xlu0 %v227
  %v261 = vpop.xlane.xlu0 %260
  %v262 = vmul.f32 %v231, 0.03125
  %v263 = vmul.f32 %v233, 0.03125
  %v264 = vmul.f32 %v235, 0.03125
  %v265 = vmul.f32 %v237, 0.03125
  %v266 = vmul.f32 %v239, 0.03125
  %v267 = vmul.f32 %v241, 0.03125
  %v268 = vmul.f32 %v243, 0.03125
  %v269 = vmul.f32 %v245, 0.03125
  %v270 = vmul.f32 %v247, 0.03125
  %v271 = vmul.f32 %v249, 0.03125
  %v272 = vmul.f32 %v251, 0.03125
  %v273 = vmul.f32 %v253, 0.03125
  %v274 = vmul.f32 %v255, 0.03125
  %v275 = vmul.f32 %v257, 0.03125
  %v276 = vmul.f32 %v259, 0.03125
  %v277 = vmul.f32 %v261, 0.03125
  %v278 = vmul.f32 %v168, %v168
  %v279 = vmul.f32 %v171, %v171
  %v280 = vmul.f32 %v176, %v176
  %v281 = vmul.f32 %v179, %v179
  %v282 = vmul.f32 %v184, %v184
  %v283 = vmul.f32 %v187, %v187
  %v284 = vmul.f32 %v192, %v192
  %v285 = vmul.f32 %v195, %v195
  %v286 = vmul.f32 %v200, %v200
  %v287 = vmul.f32 %v203, %v203
  %v288 = vmul.f32 %v208, %v208
  %v289 = vmul.f32 %v211, %v211
  %v290 = vmul.f32 %v216, %v216
  %v291 = vmul.f32 %v219, %v219
  %v292 = vmul.f32 %v224, %v224
  %v293 = vmul.f32 %v227, %v227
  %294 = vadd.xlane.f32.xlu0 %v278
  %v295 = vpop.xlane.xlu0 %294
  %296 = vadd.xlane.f32.xlu0 %v279
  %v297 = vpop.xlane.xlu0 %296
  %298 = vadd.xlane.f32.xlu0 %v280
  %v299 = vpop.xlane.xlu0 %298
  %300 = vadd.xlane.f32.xlu0 %v281
  %v301 = vpop.xlane.xlu0 %300
  %302 = vadd.xlane.f32.xlu0 %v282
  %v303 = vpop.xlane.xlu0 %302
  %304 = vadd.xlane.f32.xlu0 %v283
  %v305 = vpop.xlane.xlu0 %304
  %306 = vadd.xlane.f32.xlu0 %v284
  %v307 = vpop.xlane.xlu0 %306
  %308 = vadd.xlane.f32.xlu0 %v285
  %v309 = vpop.xlane.xlu0 %308
  %310 = vadd.xlane.f32.xlu0 %v286
  %v311 = vpop.xlane.xlu0 %310
  %312 = vadd.xlane.f32.xlu0 %v287
  %v313 = vpop.xlane.xlu0 %312
  %314 = vadd.xlane.f32.xlu0 %v288
  %v315 = vpop.xlane.xlu0 %314
  %316 = vadd.xlane.f32.xlu0 %v289
  %v317 = vpop.xlane.xlu0 %316
  %318 = vadd.xlane.f32.xlu0 %v290
  %v319 = vpop.xlane.xlu0 %318
  %320 = vadd.xlane.f32.xlu0 %v291
  %v321 = vpop.xlane.xlu0 %320
  %322 = vadd.xlane.f32.xlu0 %v292
  %v323 = vpop.xlane.xlu0 %322
  %324 = vadd.xlane.f32.xlu0 %v293
  %v325 = vpop.xlane.xlu0 %324
  %v326 = vmul.f32 %v295, 0.03125
  %v327 = vmul.f32 %v297, 0.03125
  %v328 = vmul.f32 %v299, 0.03125
  %v329 = vmul.f32 %v301, 0.03125
  %v330 = vmul.f32 %v303, 0.03125
  %v331 = vmul.f32 %v305, 0.03125
  %v332 = vmul.f32 %v307, 0.03125
  %v333 = vmul.f32 %v309, 0.03125
  %v334 = vmul.f32 %v311, 0.03125
  %v335 = vmul.f32 %v313, 0.03125
  %v336 = vmul.f32 %v315, 0.03125
  %v337 = vmul.f32 %v317, 0.03125
  %v338 = vmul.f32 %v319, 0.03125
  %v339 = vmul.f32 %v321, 0.03125
  %v340 = vmul.f32 %v323, 0.03125
  %v341 = vmul.f32 %v325, 0.03125
  %v342 = vmul.f32 %v262, %v262
  %v343 = vmul.f32 %v263, %v263
  %v344 = vmul.f32 %v264, %v264
  %v345 = vmul.f32 %v265, %v265
  %v346 = vmul.f32 %v266, %v266
  %v347 = vmul.f32 %v267, %v267
  %v348 = vmul.f32 %v268, %v268
  %v349 = vmul.f32 %v269, %v269
  %v350 = vmul.f32 %v270, %v270
  %v351 = vmul.f32 %v271, %v271
  %v352 = vmul.f32 %v272, %v272
  %v353 = vmul.f32 %v273, %v273
  %v354 = vmul.f32 %v274, %v274
  %v355 = vmul.f32 %v275, %v275
  %v356 = vmul.f32 %v276, %v276
  %v357 = vmul.f32 %v277, %v277
  %v358 = vsub.f32 %v326, %v342
  %v359 = vsub.f32 %v327, %v343
  %v360 = vsub.f32 %v328, %v344
  %v361 = vsub.f32 %v329, %v345
  %v362 = vsub.f32 %v330, %v346
  %v363 = vsub.f32 %v331, %v347
  %v364 = vsub.f32 %v332, %v348
  %v365 = vsub.f32 %v333, %v349
  %v366 = vsub.f32 %v334, %v350
  %v367 = vsub.f32 %v335, %v351
  %v368 = vsub.f32 %v336, %v352
  %v369 = vsub.f32 %v337, %v353
  %v370 = vsub.f32 %v338, %v354
  %v371 = vsub.f32 %v339, %v355
  %v372 = vsub.f32 %v340, %v356
  %v373 = vsub.f32 %v341, %v357
  %v374 = vadd.f32 %v358, 1e-05
  %v375 = vadd.f32 %v359, 1e-05
  %v376 = vadd.f32 %v360, 1e-05
  %v377 = vadd.f32 %v361, 1e-05
  %v378 = vadd.f32 %v362, 1e-05
  %v379 = vadd.f32 %v363, 1e-05
  %v380 = vadd.f32 %v364, 1e-05
  %v381 = vadd.f32 %v365, 1e-05
  %v382 = vadd.f32 %v366, 1e-05
  %v383 = vadd.f32 %v367, 1e-05
  %v384 = vadd.f32 %v368, 1e-05
  %v385 = vadd.f32 %v369, 1e-05
  %v386 = vadd.f32 %v370, 1e-05
  %v387 = vadd.f32 %v371, 1e-05
  %v388 = vadd.f32 %v372, 1e-05
  %v389 = vadd.f32 %v373, 1e-05
  %v390 = vrsqrt.pop %v374
  %v391 = vrsqrt.pop %v375
  %v392 = vrsqrt.pop %v376
  %v393 = vrsqrt.pop %v377
  %v394 = vrsqrt.pop %v378
  %v395 = vrsqrt.pop %v379
  %v396 = vrsqrt.pop %v380
  %v397 = vrsqrt.pop %v381
  %v398 = vrsqrt.pop %v382
  %v399 = vrsqrt.pop %v383
  %v400 = vrsqrt.pop %v384
  %v401 = vrsqrt.pop %v385
  %v402 = vrsqrt.pop %v386
  %v403 = vrsqrt.pop %v387
  %v404 = vrsqrt.pop %v388
  %v405 = vrsqrt.pop %v389
  %v406 = vsub.f32 %v168, %v262
  %v407 = vsub.f32 %v171, %v263
  %v408 = vsub.f32 %v176, %v264
  %v409 = vsub.f32 %v179, %v265
  %v410 = vsub.f32 %v184, %v266
  %v411 = vsub.f32 %v187, %v267
  %v412 = vsub.f32 %v192, %v268
  %v413 = vsub.f32 %v195, %v269
  %v414 = vsub.f32 %v200, %v270
  %v415 = vsub.f32 %v203, %v271
  %v416 = vsub.f32 %v208, %v272
  %v417 = vsub.f32 %v211, %v273
  %v418 = vsub.f32 %v216, %v274
  %v419 = vsub.f32 %v219, %v275
  %v420 = vsub.f32 %v224, %v276
  %v421 = vsub.f32 %v227, %v277
  %v422 = vmul.f32 %v406, %v390
  %v423 = vmul.f32 %v407, %v391
  %v424 = vmul.f32 %v408, %v392
  %v425 = vmul.f32 %v409, %v393
  %v426 = vmul.f32 %v410, %v394
  %v427 = vmul.f32 %v411, %v395
  %v428 = vmul.f32 %v412, %v396
  %v429 = vmul.f32 %v413, %v397
  %v430 = vmul.f32 %v414, %v398
  %v431 = vmul.f32 %v415, %v399
  %v432 = vmul.f32 %v416, %v400
  %v433 = vmul.f32 %v417, %v401
  %v434 = vmul.f32 %v418, %v402
  %v435 = vmul.f32 %v419, %v403
  %v436 = vmul.f32 %v420, %v404
  %v437 = vmul.f32 %v421, %v405
  %v438 = vld [vmem:[%s3] sm:$0x1]
  %v440 = vlaneseq
  %v441 = vshrl.u32 %v440, 7
  %v442 = vsub.s32 0, %v441
  %v443 = vrot.slane %v438, %v442
  %v445 = vmul.f32 %v422, %v443
  %v446 = vmul.f32 %v423, %v443
  %v447 = vmul.f32 %v424, %v443
  %v448 = vmul.f32 %v425, %v443
  %v449 = vmul.f32 %v426, %v443
  %v450 = vmul.f32 %v427, %v443
  %v451 = vmul.f32 %v428, %v443
  %v452 = vmul.f32 %v429, %v443
  %v453 = vmul.f32 %v430, %v443
  %v454 = vmul.f32 %v431, %v443
  %v455 = vmul.f32 %v432, %v443
  %v456 = vmul.f32 %v433, %v443
  %v457 = vmul.f32 %v434, %v443
  %v458 = vmul.f32 %v435, %v443
  %v459 = vmul.f32 %v436, %v443
  %v460 = vmul.f32 %v437, %v443
  %v461 = vld [vmem:[%s4] sm:$0x1]
  %v463 = vlaneseq
  %v464 = vshrl.u32 %v463, 7
  %v465 = vsub.s32 0, %v464
  %v466 = vrot.slane %v461, %v465
  %v468 = vadd.f32 %v445, %v466
  %v469 = vadd.f32 %v446, %v466
  %v470 = vadd.f32 %v447, %v466
  %v471 = vadd.f32 %v448, %v466
  %v472 = vadd.f32 %v449, %v466
  %v473 = vadd.f32 %v450, %v466
  %v474 = vadd.f32 %v451, %v466
  %v475 = vadd.f32 %v452, %v466
  %v476 = vadd.f32 %v453, %v466
  %v477 = vadd.f32 %v454, %v466
  %v478 = vadd.f32 %v455, %v466
  %v479 = vadd.f32 %v456, %v466
  %v480 = vadd.f32 %v457, %v466
  %v481 = vadd.f32 %v458, %v466
  %v482 = vadd.f32 %v459, %v466
  %v483 = vadd.f32 %v460, %v466
  %v484 = vpack.c.bf16 %v469, %v468
  %v485 = vpack.c.bf16 %v471, %v470
  %v486 = vpack.c.bf16 %v473, %v472
  %v487 = vpack.c.bf16 %v475, %v474
  %v488 = vpack.c.bf16 %v477, %v476
  %v489 = vpack.c.bf16 %v479, %v478
  %v490 = vpack.c.bf16 %v481, %v480
  %v491 = vpack.c.bf16 %v483, %v482
  %v500 = vunpack.c.l.b16 %v484
  %v501 = vunpack.c.h.b16 %v484
  %v502 = vunpack.c.l.b16 %v485
  %v503 = vunpack.c.h.b16 %v485
  %v504 = vunpack.c.l.b16 %v486
  %v505 = vunpack.c.h.b16 %v486
  %v506 = vunpack.c.l.b16 %v487
  %v507 = vunpack.c.h.b16 %v487
  %v508 = vunpack.c.l.b16 %v488
  %v509 = vunpack.c.h.b16 %v488
  %v510 = vunpack.c.l.b16 %v489
  %v511 = vunpack.c.h.b16 %v489
  %v512 = vunpack.c.l.b16 %v490
  %v513 = vunpack.c.h.b16 %v490
  %v514 = vunpack.c.l.b16 %v491
  %v515 = vunpack.c.h.b16 %v491
  %v516 = vpack.c.b16 %v500, %v500
  %v517 = vpack.c.b16 %v501, %v501
  %v518 = vpack.c.b16 %v502, %v502
  %v519 = vpack.c.b16 %v503, %v503
  %v520 = vpack.c.b16 %v504, %v504
  %v521 = vpack.c.b16 %v505, %v505
  %v522 = vpack.c.b16 %v506, %v506
  %v523 = vpack.c.b16 %v507, %v507
  %v524 = vpack.c.b16 %v508, %v508
  %v525 = vpack.c.b16 %v509, %v509
  %v526 = vpack.c.b16 %v510, %v510
  %v527 = vpack.c.b16 %v511, %v511
  %v528 = vpack.c.b16 %v512, %v512
  %v529 = vpack.c.b16 %v513, %v513
  %v530 = vpack.c.b16 %v514, %v514
  %v531 = vpack.c.b16 %v515, %v515
  %548 = vst [vmem:[%s5] sm:$0xf] %v516
  %549 = vst [vmem:[%s5 + $0x4] sm:$0xf] %v517
  %550 = vst [vmem:[%s5 + $0x8] sm:$0xf] %v518
  %551 = vst [vmem:[%s5 + $0xc] sm:$0xf] %v519
  %552 = vst [vmem:[%s5 + $0x10] sm:$0xf] %v520
  %553 = vst [vmem:[%s5 + $0x14] sm:$0xf] %v521
  %554 = vst [vmem:[%s5 + $0x18] sm:$0xf] %v522
  %555 = vst [vmem:[%s5 + $0x1c] sm:$0xf] %v523
  %556 = vst [vmem:[%s5 + $0x20] sm:$0xf] %v524
  %557 = vst [vmem:[%s5 + $0x24] sm:$0xf] %v525
  %558 = vst [vmem:[%s5 + $0x28] sm:$0xf] %v526
  %559 = vst [vmem:[%s5 + $0x2c] sm:$0xf] %v527
  %560 = vst [vmem:[%s5 + $0x30] sm:$0xf] %v528
  %561 = vst [vmem:[%s5 + $0x34] sm:$0xf] %v529
  %562 = vst [vmem:[%s5 + $0x38] sm:$0xf] %v530
  %563 = vst [vmem:[%s5 + $0x3c] sm:$0xf] %v531
  // Predicated region
  $region22: #{_downsamples_impl.1} parent=0 // pred_check
    _
  $region23: #{_downsamples_impl.1} parent=0 // pred_check_branch
    %565 = sbr.rel (0) target = $region25
  $region24: #{_downsamples_impl.1} parent=0 // pred_region
    _
  $region25: #{_downsamples_impl.1} parent=0 // pred_fallthru
    _
  // Predicated region
  $region26: #{_downsamples_impl.1} parent=0 // pred_check
    _
  $region27: #{_downsamples_impl.1} parent=0 // pred_check_branch
    %567 = sbr.rel (0) target = $region29
  $region28: #{_downsamples_impl.1} parent=0 // pred_region
    _
  $region29: #{_downsamples_impl.1} parent=0 // pred_fallthru
    _

</llo_original>
